<compile_context>
chip_gen: v6e
topology: v6e:2x2x1
jax: 0.10.0
libtpu: 0.0.40
codegen_flags: <defaults>
</compile_context>

<pallas_src>
import functools

import jax
import jax.numpy as jnp
from jax.experimental import pallas as pl
from jax.experimental.pallas import tpu as pltpu


def _masked_sim_kernel(t_ref, s_ref, m1_ref, m2_ref, o_ref, *, s_block):
    # t_ref : (1, L1, D)            test reps          (shared across s chunks)
    # s_ref : (1, s_block, L2, D)   support reps
    # m1_ref: (1, L1, 1)            test mask  (0/1, same dtype as reps)
    # m2_ref: (1, s_block, L2, 1)   support mask
    # o_ref : (1, s_block, L1, L2)
    #
    # Fold the test mask into the LHS once per step (O(L1*D) VPU work).
    t = t_ref[0] * m1_ref[0]                                   # (L1, D)
    # Static unroll over the (small) support chunk: one MXU matmul per shot.
    for si in range(s_block):
        sv = s_ref[0, si] * m2_ref[0, si]                      # (L2, D)
        # sum_d (t[q,d]*m1[q]) * (s[k,d]*m2[k]) == sim[q,k]*m1[q]*m2[k]
        o_ref[0, si] = jax.lax.dot_general(
            t, sv,
            dimension_numbers=(((1,), (1,)), ((), ())),        # contract on D
            preferred_element_type=jnp.float32,
        ).astype(o_ref.dtype)


def _choose_s_block(S, L1, L2, D, itemsize=4,
                    budget_bytes=8 * 1024 * 1024, max_unroll=8):
    """Largest divisor of S whose (double-buffered) tiles fit the VMEM budget."""
    best = 1
    for cand in range(1, min(S, max_unroll) + 1):
        if S % cand:
            continue
        per_step = cand * (L2 * D + L2 + L1 * L2) * itemsize   # support + mask + out
        if 2 * per_step <= budget_bytes:                       # double-buffered
            best = cand
    return best


def masked_similarity(test_reps, support_reps, test_mask, support_mask,
                      s_block=None):
    """
    Fused expand_it + reps_dot + mask_sim.

    test_reps:    (B, L1, D)     -- UNexpanded test reps (no support-size copy)
                  (a 4-D (B, S, L1, D) expanded tensor is also accepted)
    support_reps: (B, S, L2, D)
    test_mask:    (B, L1)        0/1   (3-D expanded form also accepted)
    support_mask: (B, S, L2)     0/1
    returns:      (B, S, L1, L2) float32
    """
    # Accept already-expanded inputs (torch-module calling convention) and
    # drop the redundant support axis instead of DMA-ing S identical copies.
    if test_reps.ndim == 4:
        test_reps = test_reps[:, 0]
    if test_mask.ndim == 3:
        test_mask = test_mask[:, 0]

    B, L1, D = test_reps.shape
    _, S, L2, _ = support_reps.shape
    dtype = test_reps.dtype

    if s_block is None:
        s_block = _choose_s_block(S, L1, L2, D, jnp.dtype(dtype).itemsize)
    n_s_chunks = S // s_block

    # Masks as trailing-1 columns so they broadcast over D inside the kernel
    # (no transpose, no rank-1 matmul).
    m1 = test_mask.astype(dtype).reshape(B, L1, 1)
    m2 = support_mask.astype(dtype).reshape(B, S, L2, 1)

    grid_spec = pltpu.PrefetchScalarGridSpec(
        num_scalar_prefetch=0,
        grid=(B, n_s_chunks),                      # s-chunks innermost
        in_specs=[
            # test side ignores the inner grid axis -> block index unchanged
            # across consecutive steps -> Pallas skips the re-DMA.
            pl.BlockSpec((1, L1, D), lambda b, sc: (b, 0, 0)),
            pl.BlockSpec((1, s_block, L2, D), lambda b, sc: (b, sc, 0, 0)),
            pl.BlockSpec((1, L1, 1), lambda b, sc: (b, 0, 0)),
            pl.BlockSpec((1, s_block, L2, 1), lambda b, sc: (b, sc, 0, 0)),
        ],
        out_specs=pl.BlockSpec((1, s_block, L1, L2), lambda b, sc: (b, sc, 0, 0)),
    )

    itemsize = jnp.dtype(dtype).itemsize
    cost = pl.CostEstimate(
        flops=2 * B * S * L1 * L2 * D,
        transcendentals=0,
        bytes_accessed=(B * L1 * D + B * S * L2 * D + B * L1 + B * S * L2) * itemsize
                       + B * S * L1 * L2 * 4,
    )

    return pl.pallas_call(
        functools.partial(_masked_sim_kernel, s_block=s_block),
        out_shape=jax.ShapeDtypeStruct((B, S, L1, L2), jnp.float32),
        grid_spec=grid_spec,
        compiler_params=pltpu.CompilerParams(
            dimension_semantics=("parallel", "arbitrary"),
            vmem_limit_bytes=32 * 1024 * 1024,     # safe on v5e/v6e/v7x
        ),
        cost_estimate=cost,
    )(test_reps, support_reps, m1, m2)


class SpanClassificationBaseJax:
    """JAX/Pallas mirror of SpanClassificationBase (forward is abstract)."""

    def __init__(self, sim_func=None, emb_log=None, scaler=None):
        self.scaler = scaler
        self.sim_func = sim_func
        self.emb_log = emb_log
        self.log_content = ''

    # Kept for API parity with the torch module; the Pallas path does NOT need
    # it (masked_similarity avoids materializing the support-size expansion).
    @staticmethod
    def expand_it(item, support_size):
        item = jnp.expand_dims(item, 1)
        return jnp.broadcast_to(item, item.shape[:1] + (support_size,) + item.shape[2:])

    # expand_it + reps_dot + mask_sim fused in the Pallas kernel
    @staticmethod
    def masked_similarity(test_reps, support_reps, test_mask, support_mask):
        return masked_similarity(test_reps, support_reps, test_mask, support_mask)

    def forward(self, *args, **kwargs):
        # TODO(synk): forward is abstract (NotImplementedError) in the reference module.
        raise NotImplementedError()


def _reference(test_reps, support_reps, test_mask, support_mask):
    # pure-JAX reference of expand_it + reps_dot + mask_sim
    # test_reps: (B, L1, D), support_reps: (B, S, L2, D)
    sim = jnp.einsum('bqd,bskd->bsqk', test_reps, support_reps)
    mask = (test_mask[:, None, :, None].astype(jnp.float32)
            * support_mask[:, :, None, :].astype(jnp.float32))
    return sim * mask


if __name__ == "__main__":
    key = jax.random.PRNGKey(0)
    B, S, L1, L2, D = 2, 2, 8, 8, 32

    k1, k2, k3, _ = jax.random.split(key, 4)
    test_reps = jax.random.normal(k1, (B, L1, D), dtype=jnp.float32)       # unexpanded
    support_reps = jax.random.normal(k2, (B, S, L2, D), dtype=jnp.float32)
    test_mask = (jnp.arange(L1)[None, :]
                 < jnp.array([6, 8])[:, None]).astype(jnp.float32)         # (B, L1)
    support_mask = (jnp.arange(L2)[None, None, :]
                    < jax.random.randint(k3, (B, S, 1), 4, L2 + 1)).astype(jnp.float32)

    module = SpanClassificationBaseJax(sim_func=None)
    out = module.masked_similarity(test_reps, support_reps, test_mask, support_mask)
    out = jax.block_until_ready(out)

    ref = _reference(test_reps, support_reps, test_mask, support_mask)
    assert out.shape == (B, S, L1, L2)
    assert jnp.allclose(out, ref, atol=1e-5, rtol=1e-5), "mismatch vs reference"
    print("KERNEL_OK")
</pallas_src>

<mosaic_0001>
module attributes {stable_mosaic.version = 11 : i64} {
  func.func @_masked_sim_kernel(%arg0: i32, %arg1: i32, %arg2: memref<1x8x32xf32, #tpu.memory_space<vmem>>, %arg3: memref<1x2x8x32xf32, #tpu.memory_space<vmem>>, %arg4: memref<1x8x1xf32, #tpu.memory_space<vmem>>, %arg5: memref<1x2x8x1xf32, #tpu.memory_space<vmem>>, %arg6: memref<1x2x8x8xf32, #tpu.memory_space<vmem>>) attributes {dimension_semantics = [#tpu.dimension_semantics<parallel>, #tpu.dimension_semantics<arbitrary>], iteration_bounds = array<i64: 2, 1>, scalar_prefetch = 0 : i64, scratch_operands = 0 : i64, tpu.core_type = #tpu.core_type<tc>, window_params = [{transform_indices = @transform_0, window_bounds = array<i64: 1, 8, 32>}, {transform_indices = @transform_1, window_bounds = array<i64: 1, 2, 8, 32>}, {transform_indices = @transform_2, window_bounds = array<i64: 1, 8, 1>}, {transform_indices = @transform_3, window_bounds = array<i64: 1, 2, 8, 1>}, {transform_indices = @transform_4, window_bounds = array<i64: 1, 2, 8, 8>}]} {
    %c0 = arith.constant 0 : index
    %c0_0 = arith.constant 0 : index
    %c0_1 = arith.constant 0 : index
    %0 = vector.load %arg2[%c0, %c0_0, %c0_1] : memref<1x8x32xf32, #tpu.memory_space<vmem>>, vector<1x8x32xf32>
    %1 = vector.shape_cast %0 : vector<1x8x32xf32> to vector<8x32xf32>
    %c0_2 = arith.constant 0 : index
    %c0_3 = arith.constant 0 : index
    %c0_4 = arith.constant 0 : index
    %2 = vector.load %arg4[%c0_2, %c0_3, %c0_4] : memref<1x8x1xf32, #tpu.memory_space<vmem>>, vector<1x8x1xf32>
    %3 = vector.shape_cast %2 : vector<1x8x1xf32> to vector<8x1xf32>
    %4 = vector.broadcast %3 : vector<8x1xf32> to vector<8x32xf32>
    %5 = arith.mulf %1, %4 : vector<8x32xf32>
    %c0_5 = arith.constant 0 : index
    %c0_6 = arith.constant 0 : index
    %c0_7 = arith.constant 0 : index
    %c0_8 = arith.constant 0 : index
    %6 = vector.load %arg3[%c0_5, %c0_6, %c0_7, %c0_8] : memref<1x2x8x32xf32, #tpu.memory_space<vmem>>, vector<1x1x8x32xf32>
    %7 = vector.shape_cast %6 : vector<1x1x8x32xf32> to vector<8x32xf32>
    %c0_9 = arith.constant 0 : index
    %c0_10 = arith.constant 0 : index
    %c0_11 = arith.constant 0 : index
    %c0_12 = arith.constant 0 : index
    %8 = vector.load %arg5[%c0_9, %c0_10, %c0_11, %c0_12] : memref<1x2x8x1xf32, #tpu.memory_space<vmem>>, vector<1x1x8x1xf32>
    %9 = vector.shape_cast %8 : vector<1x1x8x1xf32> to vector<8x1xf32>
    %10 = vector.broadcast %9 : vector<8x1xf32> to vector<8x32xf32>
    %11 = arith.mulf %7, %10 : vector<8x32xf32>
    %cst = arith.constant dense<0.000000e+00> : vector<8x8xf32>
    %12 = tpu.matmul %5, %11, %cst {dimension_numbers = #tpu.dot_dimension_numbers<[1], [1], [0], [0], [0, 0, 1, 0], [], []>} : vector<8x32xf32>, vector<8x32xf32>, vector<8x8xf32> -> vector<8x8xf32>
    %c0_13 = arith.constant 0 : index
    %c0_14 = arith.constant 0 : index
    %c0_15 = arith.constant 0 : index
    %c0_16 = arith.constant 0 : index
    %13 = vector.load %arg6[%c0_13, %c0_14, %c0_15, %c0_16] : memref<1x2x8x8xf32, #tpu.memory_space<vmem>>, vector<1x1x8x8xf32>
    %14 = vector.shape_cast %13 : vector<1x1x8x8xf32> to vector<8x8xf32>
    %15 = vector.shape_cast %12 : vector<8x8xf32> to vector<1x1x8x8xf32>
    tpu.vector_store %arg6[%c0_13, %c0_14, %c0_15, %c0_16], %15 {strides = array<i32>} : memref<1x2x8x8xf32, #tpu.memory_space<vmem>>, vector<1x1x8x8xf32>,
    %c0_17 = arith.constant 0 : index
    %c1 = arith.constant 1 : index
    %c0_18 = arith.constant 0 : index
    %c0_19 = arith.constant 0 : index
    %16 = vector.load %arg3[%c0_17, %c1, %c0_18, %c0_19] : memref<1x2x8x32xf32, #tpu.memory_space<vmem>>, vector<1x1x8x32xf32>
    %17 = vector.shape_cast %16 : vector<1x1x8x32xf32> to vector<8x32xf32>
    %c0_20 = arith.constant 0 : index
    %c1_21 = arith.constant 1 : index
    %c0_22 = arith.constant 0 : index
    %c0_23 = arith.constant 0 : index
    %18 = vector.load %arg5[%c0_20, %c1_21, %c0_22, %c0_23] : memref<1x2x8x1xf32, #tpu.memory_space<vmem>>, vector<1x1x8x1xf32>
    %19 = vector.shape_cast %18 : vector<1x1x8x1xf32> to vector<8x1xf32>
    %20 = vector.broadcast %19 : vector<8x1xf32> to vector<8x32xf32>
    %21 = arith.mulf %17, %20 : vector<8x32xf32>
    %cst_24 = arith.constant dense<0.000000e+00> : vector<8x8xf32>
    %22 = tpu.matmul %5, %21, %cst_24 {dimension_numbers = #tpu.dot_dimension_numbers<[1], [1], [0], [0], [0, 0, 1, 0], [], []>} : vector<8x32xf32>, vector<8x32xf32>, vector<8x8xf32> -> vector<8x8xf32>
    %c0_25 = arith.constant 0 : index
    %c1_26 = arith.constant 1 : index
    %c0_27 = arith.constant 0 : index
    %c0_28 = arith.constant 0 : index
    %23 = vector.load %arg6[%c0_25, %c1_26, %c0_27, %c0_28] : memref<1x2x8x8xf32, #tpu.memory_space<vmem>>, vector<1x1x8x8xf32>
    %24 = vector.shape_cast %23 : vector<1x1x8x8xf32> to vector<8x8xf32>
    %25 = vector.shape_cast %22 : vector<8x8xf32> to vector<1x1x8x8xf32>
    tpu.vector_store %arg6[%c0_25, %c1_26, %c0_27, %c0_28], %25 {strides = array<i32>} : memref<1x2x8x8xf32, #tpu.memory_space<vmem>>, vector<1x1x8x8xf32>,
    return
  }
  func.func @transform_0(%arg0: i32, %arg1: i32) -> (i32, i32, i32) {
    %c0_i32 = arith.constant 0 : i32
    %c0_i32_0 = arith.constant 0 : i32
    %c0_i32_1 = arith.constant 0 : i32
    return %arg0, %c0_i32, %c0_i32_0 : i32, i32, i32
  }
  func.func @transform_1(%arg0: i32, %arg1: i32) -> (i32, i32, i32, i32) {
    %c0_i32 = arith.constant 0 : i32
    %c0_i32_0 = arith.constant 0 : i32
    %c0_i32_1 = arith.constant 0 : i32
    return %arg0, %arg1, %c0_i32, %c0_i32_0 : i32, i32, i32, i32
  }
  func.func @transform_2(%arg0: i32, %arg1: i32) -> (i32, i32, i32) {
    %c0_i32 = arith.constant 0 : i32
    %c0_i32_0 = arith.constant 0 : i32
    %c0_i32_1 = arith.constant 0 : i32
    return %arg0, %c0_i32, %c0_i32_0 : i32, i32, i32
  }
  func.func @transform_3(%arg0: i32, %arg1: i32) -> (i32, i32, i32, i32) {
    %c0_i32 = arith.constant 0 : i32
    %c0_i32_0 = arith.constant 0 : i32
    %c0_i32_1 = arith.constant 0 : i32
    return %arg0, %arg1, %c0_i32, %c0_i32_0 : i32, i32, i32, i32
  }
  func.func @transform_4(%arg0: i32, %arg1: i32) -> (i32, i32, i32, i32) {
    %c0_i32 = arith.constant 0 : i32
    %c0_i32_0 = arith.constant 0 : i32
    %c0_i32_1 = arith.constant 0 : i32
    return %arg0, %arg1, %c0_i32, %c0_i32_0 : i32, i32, i32, i32
  }
}

</mosaic_0001>

<llo_original>
// kernel: tpu_custom_call.1
$region0: #{tpu_custom_call.1}
  #allocation0 [shape = 'u32[]', space=smem, size = 0x4, offset = 0x4, fixed_abs, tag = 'smem constant byte address 0x4 - core index']
  #allocation1 [shape = 'u32[144,128]{1,0:T(1,128)}', space=vmem, size = 0x12000, scoped, tag = 'internal scratch']
  %s0 = inlined_call_operand.vmem [shape: f32[2,8,32], index: 0, kind: input, shape index: {}]
  %s1 = inlined_call_operand.vmem [shape: f32[2,2,8,32], index: 1, kind: input, shape index: {}]
  %s2 = inlined_call_operand.vmem [shape: f32[2,8,1], index: 2, kind: input, shape index: {}]
  %s3 = inlined_call_operand.vmem [shape: f32[2,2,8,1], index: 3, kind: input, shape index: {}]
  %s4 = inlined_call_operand.hbm [shape: f32[2,2,8,8], index: 4, kind: output, shape index: {}]
  %s5 = sld [smem:[#allocation0]]
  $region49: #{tpu_custom_call.1} parent=0
    _
  %s7 = ssub.s32 1, %s5
  %s8 = scalar_select 0, %s7, %s5
  $region1: #{tpu_custom_call.1} parent=0
    #allocation2 [shape = 'u8[16384]{0}', space=vmem, size = 0x4000, scoped, tag = 'output window, operand 0']
    #allocation3 [shape = 's32[2]{0}', space=sflag, size = 0x8, scoped, tag = 'scoped memory for tpu_custom_call.1']
    %9 = vsyncpa [#allocation3], 0
    %s10 = scalar_lea.sflag [#allocation3], 1
    %11 = vsyncpa %s10, 0
    loop: start=0, step=1, limit=4
    $region2: #{tpu_custom_call.1} parent=1 // loop_pre_header
      _
    $region3: #{tpu_custom_call.1} parent=1 // loop_header
      %s13 = sphi 0, %s17
      %p14 = scmp.ge.s32.totalorder %s13, 4
      %s20 = sphi 0, %s32
      %s21 = sphi 0, %s28
      %s22 = sphi 0, %s20
      %s23 = sphi 0, %s21
      %s24 = sphi 0, %s22
      %s25 = sphi 0, %s23
      %s35 = sphi 0, %s37
      %s38 = sphi 0, %s35
      %s39 = sphi 0, %s38
      %s55 = sphi 0, %s39
      %s63 = sphi 0, %s65
      %s66 = sphi 0, %s63
      %s67 = sphi 0, %s66
      %s83 = sphi 0, %s67
      %s89 = sphi 0, %s91
      %s92 = sphi 0, %s89
      %s93 = sphi 0, %s92
      %s109 = sphi 0, %s93
      %s117 = sphi 0, %s119
      %s120 = sphi 0, %s117
      %s121 = sphi 0, %s120
      %s137 = sphi 0, %s121
      %s145 = sphi 0, %s147
      %s148 = sphi 0, %s145
      %s149 = sphi 0, %s148
      %s165 = sphi 0, %s149
    $region4: #{tpu_custom_call.1} parent=1 // loop_header_branch
      %16 = sbr.rel (%p14) target = $region8
    $region5: #{tpu_custom_call.1} parent=1 // loop_body
      %s18 = ssub.s32 %s13, 1
      %s19 = ssub.s32 %s13, 2
      %s26 = sadd.s32 1, %s21
      %p27 = scmp.ge.s32.totalorder %s26, 1
      %s28 = scalar_select %p27, 0, %s26
      %s29 = sadd.s32 1, %s20
      %s30 = scalar_select %p27, %s29, %s20
      %p31 = scmp.ge.s32.totalorder %s30, 2
      %s32 = scalar_select %p31, 0, %s30
      %s33 = ssub.s32 %s20, %s32
      %p34 = scmp.eq.s32.totalorder %s33, 0
      %s36 = sadd.s32 %s35, 1
      %s37 = scalar_select %p34, %s35, %s36
      %p40 = pneg %p34
      %p41 = scmp.eq.s32.totalorder %s13, 1
      %p42 = por %p40, %p41
      %p43 = scmp.ne.s32.totalorder %s35, %s38
      %p44 = scmp.eq.s32.totalorder %s13, 0
      %p45 = por %p43, %p44
      %p46 = scmp.ne.s32.totalorder %s35, %s38
      %p47 = scmp.eq.s32.totalorder %s18, 1
      %p48 = por %p46, %p47
      %p49 = scmp.ne.s32.totalorder %s38, %s39
      %p50 = scmp.eq.s32.totalorder %s18, 0
      %p51 = por %p49, %p50
      %p52 = scmp.ne.s32.totalorder %s38, %s39
      %p53 = scmp.eq.s32.totalorder %s19, 1
      %p54 = por %p52, %p53
      %p56 = scmp.ne.s32.totalorder %s39, %s55
      %p57 = scmp.eq.s32.totalorder %s19, 0
      %p58 = por %p56, %p57
      %s59 = ssub.s32 %s20, %s32
      %s60 = ssub.s32 %s21, %s28
      %s61 = sor.u32 %s59, %s60
      %p62 = scmp.eq.s32.totalorder %s61, 0
      %s64 = sadd.s32 %s63, 1
      %s65 = scalar_select %p62, %s63, %s64
      %p68 = pneg %p62
      %p69 = scmp.eq.s32.totalorder %s13, 1
      %p70 = por %p68, %p69
      %p71 = scmp.ne.s32.totalorder %s63, %s66
      %p72 = scmp.eq.s32.totalorder %s13, 0
      %p73 = por %p71, %p72
      %p74 = scmp.ne.s32.totalorder %s63, %s66
      %p75 = scmp.eq.s32.totalorder %s18, 1
      %p76 = por %p74, %p75
      %p77 = scmp.ne.s32.totalorder %s66, %s67
      %p78 = scmp.eq.s32.totalorder %s18, 0
      %p79 = por %p77, %p78
      %p80 = scmp.ne.s32.totalorder %s66, %s67
      %p81 = scmp.eq.s32.totalorder %s19, 1
      %p82 = por %p80, %p81
      %p84 = scmp.ne.s32.totalorder %s67, %s83
      %p85 = scmp.eq.s32.totalorder %s19, 0
      %p86 = por %p84, %p85
      %s87 = ssub.s32 %s20, %s32
      %p88 = scmp.eq.s32.totalorder %s87, 0
      %s90 = sadd.s32 %s89, 1
      %s91 = scalar_select %p88, %s89, %s90
      %p94 = pneg %p88
      %p95 = scmp.eq.s32.totalorder %s13, 1
      %p96 = por %p94, %p95
      %p97 = scmp.ne.s32.totalorder %s89, %s92
      %p98 = scmp.eq.s32.totalorder %s13, 0
      %p99 = por %p97, %p98
      %p100 = scmp.ne.s32.totalorder %s89, %s92
      %p101 = scmp.eq.s32.totalorder %s18, 1
      %p102 = por %p100, %p101
      %p103 = scmp.ne.s32.totalorder %s92, %s93
      %p104 = scmp.eq.s32.totalorder %s18, 0
      %p105 = por %p103, %p104
      %p106 = scmp.ne.s32.totalorder %s92, %s93
      %p107 = scmp.eq.s32.totalorder %s19, 1
      %p108 = por %p106, %p107
      %p110 = scmp.ne.s32.totalorder %s93, %s109
      %p111 = scmp.eq.s32.totalorder %s19, 0
      %p112 = por %p110, %p111
      %s113 = ssub.s32 %s20, %s32
      %s114 = ssub.s32 %s21, %s28
      %s115 = sor.u32 %s113, %s114
      %p116 = scmp.eq.s32.totalorder %s115, 0
      %s118 = sadd.s32 %s117, 1
      %s119 = scalar_select %p116, %s117, %s118
      %p122 = pneg %p116
      %p123 = scmp.eq.s32.totalorder %s13, 1
      %p124 = por %p122, %p123
      %p125 = scmp.ne.s32.totalorder %s117, %s120
      %p126 = scmp.eq.s32.totalorder %s13, 0
      %p127 = por %p125, %p126
      %p128 = scmp.ne.s32.totalorder %s117, %s120
      %p129 = scmp.eq.s32.totalorder %s18, 1
      %p130 = por %p128, %p129
      %p131 = scmp.ne.s32.totalorder %s120, %s121
      %p132 = scmp.eq.s32.totalorder %s18, 0
      %p133 = por %p131, %p132
      %p134 = scmp.ne.s32.totalorder %s120, %s121
      %p135 = scmp.eq.s32.totalorder %s19, 1
      %p136 = por %p134, %p135
      %p138 = scmp.ne.s32.totalorder %s121, %s137
      %p139 = scmp.eq.s32.totalorder %s19, 0
      %p140 = por %p138, %p139
      %s141 = ssub.s32 %s20, %s32
      %s142 = ssub.s32 %s21, %s28
      %s143 = sor.u32 %s141, %s142
      %p144 = scmp.eq.s32.totalorder %s143, 0
      %s146 = sadd.s32 %s145, 1
      %s147 = scalar_select %p144, %s145, %s146
      %p150 = pneg %p144
      %p151 = scmp.eq.s32.totalorder %s13, 1
      %p152 = por %p150, %p151
      %p153 = scmp.ne.s32.totalorder %s145, %s148
      %p154 = scmp.eq.s32.totalorder %s13, 0
      %p155 = por %p153, %p154
      %p156 = scmp.ne.s32.totalorder %s145, %s148
      %p157 = scmp.eq.s32.totalorder %s18, 1
      %p158 = por %p156, %p157
      %p159 = scmp.ne.s32.totalorder %s148, %s149
      %p160 = scmp.eq.s32.totalorder %s18, 0
      %p161 = por %p159, %p160
      %p162 = scmp.ne.s32.totalorder %s148, %s149
      %p163 = scmp.eq.s32.totalorder %s19, 1
      %p164 = por %p162, %p163
      %p166 = scmp.ne.s32.totalorder %s149, %s165
      %p167 = scmp.eq.s32.totalorder %s19, 0
      %p168 = por %p166, %p167
      %p169 = scmp.le.s32.totalorder 1, %s13
      %p170 = scmp.lt.s32.totalorder %s13, 3
      %p171 = pnand %p169, %p170
      %p172 = pneg %p171
      // Predicated region
      $region9: #{tpu_custom_call.1} parent=5 // pred_check
        _
      $region10: #{tpu_custom_call.1} parent=5 // pred_check_branch
        %174 = sbr.rel (%p171) target = $region12
      $region11: #{tpu_custom_call.1} parent=5 // pred_region
        %s175 = ssub.s32 %s13, 1
      $region12: #{tpu_custom_call.1} parent=5 // pred_fallthru
        _
      %p176 = scmp.lt.s32.totalorder %s13, 2
      // Predicated region
      $region13: #{tpu_custom_call.1} parent=5 // pred_check
        %p177 = pneg %p176
      $region14: #{tpu_custom_call.1} parent=5 // pred_check_branch
        %179 = sbr.rel (%p177) target = $region16
      $region15: #{tpu_custom_call.1} parent=5 // pred_region
        // Predicated region
        $region17: #{tpu_custom_call.1} parent=15 // pred_check
          %p180 = pneg %p45
        $region18: #{tpu_custom_call.1} parent=15 // pred_check_branch
          %182 = sbr.rel (%p180) target = $region20
        $region19: #{tpu_custom_call.1} parent=15 // pred_region
          %p183 = scmp.lt.s32.totalorder %s20, 1
          %s184 = scalar_select %p183, %s20, 1
          %s185 = smul.addr %s184, 8
          %s186 = scalar_lea.vmem %s0, %s185
        $region20: #{tpu_custom_call.1} parent=15 // pred_fallthru
          _
        // Predicated region
        $region21: #{tpu_custom_call.1} parent=15 // pred_check
          %p187 = pneg %p73
        $region22: #{tpu_custom_call.1} parent=15 // pred_check_branch
          %189 = sbr.rel (%p187) target = $region24
        $region23: #{tpu_custom_call.1} parent=15 // pred_region
          %s190 = smul.u32 2, %s21
          %p191 = scmp.lt.s32.totalorder %s20, 1
          %s192 = scalar_select %p191, %s20, 1
          %p193 = scmp.lt.s32.totalorder %s190, 1
          %s194 = scalar_select %p193, %s190, 1
          %s195 = smul.addr %s192, 2
          %s196 = sadd.s32 %s194, %s195
          %s197 = smul.addr %s196, 8
          %s198 = scalar_lea.vmem %s1, %s197
          %s199 = smul.u32 2, %s21
        $region24: #{tpu_custom_call.1} parent=15 // pred_fallthru
          _
        // Predicated region
        $region25: #{tpu_custom_call.1} parent=15 // pred_check
          %p200 = pneg %p99
        $region26: #{tpu_custom_call.1} parent=15 // pred_check_branch
          %202 = sbr.rel (%p200) target = $region28
        $region27: #{tpu_custom_call.1} parent=15 // pred_region
          %p203 = scmp.lt.s32.totalorder %s20, 1
          %s204 = scalar_select %p203, %s20, 1
          %s205 = smul.addr %s204, 8
          %s206 = scalar_lea.vmem %s2, %s205
        $region28: #{tpu_custom_call.1} parent=15 // pred_fallthru
          _
        // Predicated region
        $region29: #{tpu_custom_call.1} parent=15 // pred_check
          %p207 = pneg %p127
        $region30: #{tpu_custom_call.1} parent=15 // pred_check_branch
          %209 = sbr.rel (%p207) target = $region32
        $region31: #{tpu_custom_call.1} parent=15 // pred_region
          %s210 = smul.u32 2, %s21
          %p211 = scmp.lt.s32.totalorder %s20, 1
          %s212 = scalar_select %p211, %s20, 1
          %p213 = scmp.lt.s32.totalorder %s210, 1
          %s214 = scalar_select %p213, %s210, 1
          %s215 = smul.addr %s212, 2
          %s216 = sadd.s32 %s214, %s215
          %s217 = smul.addr %s216, 8
          %s218 = scalar_lea.vmem %s3, %s217
          %s219 = smul.u32 2, %s21
        $region32: #{tpu_custom_call.1} parent=15 // pred_fallthru
          _
      $region16: #{tpu_custom_call.1} parent=5 // pred_fallthru
        _
      %p220 = scmp.le.s32.totalorder 1, %s13
      %p221 = scmp.lt.s32.totalorder %s13, 3
      %p222 = pnand %p220, %p221
      %p223 = pneg %p222
      // Predicated region
      $region33: #{tpu_custom_call.1} parent=5 // pred_check
        _
      $region34: #{tpu_custom_call.1} parent=5 // pred_check_branch
        %225 = sbr.rel (%p222) target = $region36
      $region35: #{tpu_custom_call.1} parent=5 // pred_region
        %s226 = ssub.s32 %s13, 1
        %p227 = scmp.lt.s32.totalorder %s22, 1
        %s228 = scalar_select %p227, %s22, 1
        %s229 = smul.addr %s228, 8
        %s230 = scalar_lea.vmem %s0, %s229
        %p231 = pneg %p51
        %p232 = pneg %p48
        %s233 = smul.u32 2, %s23
        %p234 = scmp.lt.s32.totalorder %s22, 1
        %s235 = scalar_select %p234, %s22, 1
        %p236 = scmp.lt.s32.totalorder %s233, 1
        %s237 = scalar_select %p236, %s233, 1
        %s238 = smul.addr %s235, 2
        %s239 = sadd.s32 %s237, %s238
        %s240 = smul.addr %s239, 8
        %s241 = scalar_lea.vmem %s1, %s240
        %p242 = pneg %p79
        %p243 = pneg %p76
        %p244 = scmp.lt.s32.totalorder %s22, 1
        %s245 = scalar_select %p244, %s22, 1
        %s246 = smul.addr %s245, 8
        %s247 = scalar_lea.vmem %s2, %s246
        %p248 = pneg %p105
        %p249 = pneg %p102
        %s250 = smul.u32 2, %s23
        %p251 = scmp.lt.s32.totalorder %s22, 1
        %s252 = scalar_select %p251, %s22, 1
        %p253 = scmp.lt.s32.totalorder %s250, 1
        %s254 = scalar_select %p253, %s250, 1
        %s255 = smul.addr %s252, 2
        %s256 = sadd.s32 %s254, %s255
        %s257 = smul.addr %s256, 8
        %s258 = scalar_lea.vmem %s3, %s257
        %p259 = pneg %p133
        %p260 = pneg %p130
        %p261 = pneg %p161
        %p262 = pneg %p158
        %s263 = sand.u32 %s148, 1
        %s264 = scalar_lea.sflag [#allocation3], %s263
        %s265 = sand.u32 %s148, 1
        %s266 = smul.addr %s265, 16
        %s267 = scalar_lea.vmem [#allocation2], %s266
        %p268 = scmp.lt.s32.totalorder %s22, 1
        %s269 = scalar_select %p268, %s22, 1
        %s270 = smul.addr %s269, 8
        %s271 = scalar_lea.vmem %s0, %s270
        %s272 = smul.u32 2, %s23
        %p273 = scmp.lt.s32.totalorder %s22, 1
        %s274 = scalar_select %p273, %s22, 1
        %p275 = scmp.lt.s32.totalorder %s272, 1
        %s276 = scalar_select %p275, %s272, 1
        %s277 = smul.addr %s274, 2
        %s278 = sadd.s32 %s276, %s277
        %s279 = smul.addr %s278, 8
        %s280 = scalar_lea.vmem %s1, %s279
        %s281 = smul.u32 2, %s23
        %p282 = scmp.lt.s32.totalorder %s22, 1
        %s283 = scalar_select %p282, %s22, 1
        %s284 = smul.addr %s283, 8
        %s285 = scalar_lea.vmem %s2, %s284
        %s286 = smul.u32 2, %s23
        %p287 = scmp.lt.s32.totalorder %s22, 1
        %s288 = scalar_select %p287, %s22, 1
        %p289 = scmp.lt.s32.totalorder %s286, 1
        %s290 = scalar_select %p289, %s286, 1
        %s291 = smul.addr %s288, 2
        %s292 = sadd.s32 %s290, %s291
        %s293 = smul.addr %s292, 8
        %s294 = scalar_lea.vmem %s3, %s293
        %s295 = smul.u32 2, %s23
        %s296 = smul.u32 2, %s23
        %v297 = vld [vmem:[%s271] sm:$0xff]
        %v298 = vld [vmem:[%s285] sm:$0xff]
        %300 = vset.pattern.permute.xlu0 0
        %301 = vperm.xlu0 %300, %v298
        %v302 = vpop.permute.xlu0 %301
        %v304 = vmul.f32 %v297, %v302
        %v305 = vld [vmem:[%s280] sm:$0xff]
        %v306 = vld [vmem:[%s294] sm:$0xff]
        %308 = vset.pattern.permute.xlu0 0
        %309 = vperm.xlu0 %308, %v306
        %v310 = vpop.permute.xlu0 %309
        %v312 = vmul.f32 %v305, %v310
        %vm313 = vcmask 261120
        %v315 = vsel %vm313, %v304, 0
        %v318 = vsel %vm313, %v312, 0
        %320 = vmatprep.subr.mxu0 0.0
        %321 = vmatpush1.xpose.msra.mxu0 0.0
        %322 = vmatprep.subr.mxu0 0.0
        %323 = vmatpush1.xpose.msra.mxu0 0.0
        %324 = vmatprep.subr.mxu0 0.0
        %325 = vmatpush1.xpose.msra.mxu0 0.0
        %326 = vmatprep.subr.mxu0 0.0
        %327 = vmatpush1.xpose.msra.mxu0 0.0
        %328 = vmatprep.subr.mxu0 0.0
        %329 = vmatpush1.xpose.msra.mxu0 0.0
        %330 = vmatprep.subr.mxu0 0.0
        %331 = vmatpush1.xpose.msra.mxu0 0.0
        %332 = vmatprep.subr.mxu0 0.0
        %333 = vmatpush1.xpose.msra.mxu0 0.0
        %334 = vmatprep.subr.mxu0 0.0
        %335 = vmatpush1.xpose.msra.mxu0 0.0
        %336 = vmatprep.subr.mxu0 0.0
        %337 = vmatpush1.xpose.msra.mxu0 0.0
        %338 = vmatprep.subr.mxu0 0.0
        %339 = vmatpush1.xpose.msra.mxu0 0.0
        %340 = vmatprep.subr.mxu0 0.0
        %341 = vmatpush1.xpose.msra.mxu0 0.0
        %342 = vmatprep.subr.mxu0 0.0
        %343 = vmatpush1.xpose.msra.mxu0 0.0
        %344 = vmatprep.subr.mxu0 0.0
        %345 = vmatpush1.xpose.msra.mxu0 0.0
        %346 = vmatprep.subr.mxu0 0.0
        %347 = vmatpush1.xpose.msra.mxu0 0.0
        %348 = vmatprep.subr.mxu0 0.0
        %349 = vmatpush1.xpose.msra.mxu0 0.0
        %350 = vmatprep.subr.mxu0 0.0
        %351 = vmatpush1.xpose.msra.mxu0 %v318
        %352 = vmatprep.subr.mxu0 0.0
        %353 = vmatpush2.xpose.msra.mxu0 0.0
        %354 = vmatprep.subr.mxu0 0.0
        %355 = vmatpush2.xpose.msra.mxu0 0.0
        %356 = vmatprep.subr.mxu0 0.0
        %357 = vmatpush2.xpose.msra.mxu0 0.0
        %358 = vmatprep.subr.mxu0 0.0
        %359 = vmatpush2.xpose.msra.mxu0 0.0
        %360 = vmatprep.subr.mxu0 0.0
        %361 = vmatpush2.xpose.msra.mxu0 0.0
        %362 = vmatprep.subr.mxu0 0.0
        %363 = vmatpush2.xpose.msra.mxu0 0.0
        %364 = vmatprep.subr.mxu0 0.0
        %365 = vmatpush2.xpose.msra.mxu0 0.0
        %366 = vmatprep.subr.mxu0 0.0
        %367 = vmatpush2.xpose.msra.mxu0 0.0
        %368 = vmatprep.subr.mxu0 0.0
        %369 = vmatpush2.xpose.msra.mxu0 0.0
        %370 = vmatprep.subr.mxu0 0.0
        %371 = vmatpush2.xpose.msra.mxu0 0.0
        %372 = vmatprep.subr.mxu0 0.0
        %373 = vmatpush2.xpose.msra.mxu0 0.0
        %374 = vmatprep.subr.mxu0 0.0
        %375 = vmatpush2.xpose.msra.mxu0 0.0
        %376 = vmatprep.subr.mxu0 0.0
        %377 = vmatpush2.xpose.msra.mxu0 0.0
        %378 = vmatprep.subr.mxu0 0.0
        %379 = vmatpush2.xpose.msra.mxu0 0.0
        %380 = vmatprep.subr.mxu0 0.0
        %381 = vmatpush2.xpose.msra.mxu0 0.0
        %382 = vmatprep.subr.mxu0 0.0
        %383 = vmatpush2.xpose.msra.mxu0 0.0
        %384 = vmatprep.mubr.f32.mxu0 0.0
        %385 = vmatmul.mubr.f32.gmra.mxu0 %v315
        %v386 = vpop.f32.mrf.mxu0
        %v387 = vadd.f32 0.0, %v386
        %v388 = vpop.f32.mrf.mxu0
        %389 = vdwg.mxu0
        %vm390 = vcmask 64512
        %391 = vst.msk [vmem:[%s267] sm:$0xff] %vm390, %v387
        %s392 = scalar_lea.vmem %s280, 8
        %v393 = vld [vmem:[%s392] sm:$0xff]
        %s394 = scalar_lea.vmem %s294, 8
        %v395 = vld [vmem:[%s394] sm:$0xff]
        %397 = vset.pattern.permute.xlu0 0
        %398 = vperm.xlu0 %397, %v395
        %v399 = vpop.permute.xlu0 %398
        %v401 = vmul.f32 %v393, %v399
        %v403 = vsel %vm313, %v401, 0
        %405 = vmatprep.subr.mxu0 0.0
        %406 = vmatpush1.xpose.msra.mxu0 0.0
        %407 = vmatprep.subr.mxu0 0.0
        %408 = vmatpush1.xpose.msra.mxu0 0.0
        %409 = vmatprep.subr.mxu0 0.0
        %410 = vmatpush1.xpose.msra.mxu0 0.0
        %411 = vmatprep.subr.mxu0 0.0
        %412 = vmatpush1.xpose.msra.mxu0 0.0
        %413 = vmatprep.subr.mxu0 0.0
        %414 = vmatpush1.xpose.msra.mxu0 0.0
        %415 = vmatprep.subr.mxu0 0.0
        %416 = vmatpush1.xpose.msra.mxu0 0.0
        %417 = vmatprep.subr.mxu0 0.0
        %418 = vmatpush1.xpose.msra.mxu0 0.0
        %419 = vmatprep.subr.mxu0 0.0
        %420 = vmatpush1.xpose.msra.mxu0 0.0
        %421 = vmatprep.subr.mxu0 0.0
        %422 = vmatpush1.xpose.msra.mxu0 0.0
        %423 = vmatprep.subr.mxu0 0.0
        %424 = vmatpush1.xpose.msra.mxu0 0.0
        %425 = vmatprep.subr.mxu0 0.0
        %426 = vmatpush1.xpose.msra.mxu0 0.0
        %427 = vmatprep.subr.mxu0 0.0
        %428 = vmatpush1.xpose.msra.mxu0 0.0
        %429 = vmatprep.subr.mxu0 0.0
        %430 = vmatpush1.xpose.msra.mxu0 0.0
        %431 = vmatprep.subr.mxu0 0.0
        %432 = vmatpush1.xpose.msra.mxu0 0.0
        %433 = vmatprep.subr.mxu0 0.0
        %434 = vmatpush1.xpose.msra.mxu0 0.0
        %435 = vmatprep.subr.mxu0 0.0
        %436 = vmatpush1.xpose.msra.mxu0 %v403
        %437 = vmatprep.subr.mxu0 0.0
        %438 = vmatpush2.xpose.msra.mxu0 0.0
        %439 = vmatprep.subr.mxu0 0.0
        %440 = vmatpush2.xpose.msra.mxu0 0.0
        %441 = vmatprep.subr.mxu0 0.0
        %442 = vmatpush2.xpose.msra.mxu0 0.0
        %443 = vmatprep.subr.mxu0 0.0
        %444 = vmatpush2.xpose.msra.mxu0 0.0
        %445 = vmatprep.subr.mxu0 0.0
        %446 = vmatpush2.xpose.msra.mxu0 0.0
        %447 = vmatprep.subr.mxu0 0.0
        %448 = vmatpush2.xpose.msra.mxu0 0.0
        %449 = vmatprep.subr.mxu0 0.0
        %450 = vmatpush2.xpose.msra.mxu0 0.0
        %451 = vmatprep.subr.mxu0 0.0
        %452 = vmatpush2.xpose.msra.mxu0 0.0
        %453 = vmatprep.subr.mxu0 0.0
        %454 = vmatpush2.xpose.msra.mxu0 0.0
        %455 = vmatprep.subr.mxu0 0.0
        %456 = vmatpush2.xpose.msra.mxu0 0.0
        %457 = vmatprep.subr.mxu0 0.0
        %458 = vmatpush2.xpose.msra.mxu0 0.0
        %459 = vmatprep.subr.mxu0 0.0
        %460 = vmatpush2.xpose.msra.mxu0 0.0
        %461 = vmatprep.subr.mxu0 0.0
        %462 = vmatpush2.xpose.msra.mxu0 0.0
        %463 = vmatprep.subr.mxu0 0.0
        %464 = vmatpush2.xpose.msra.mxu0 0.0
        %465 = vmatprep.subr.mxu0 0.0
        %466 = vmatpush2.xpose.msra.mxu0 0.0
        %467 = vmatprep.subr.mxu0 0.0
        %468 = vmatpush2.xpose.msra.mxu0 0.0
        %469 = vmatprep.mubr.f32.mxu0 0.0
        %470 = vmatmul.mubr.f32.gmra.mxu0 %v315
        %v471 = vpop.f32.mrf.mxu0
        %v472 = vadd.f32 0.0, %v471
        %v473 = vpop.f32.mrf.mxu0
        %474 = vdwg.mxu0
        %s475 = scalar_lea.vmem %s267, 8 [#allocation2]
        %476 = vst.msk [vmem:[%s475] sm:$0xff] %vm390, %v472
        %s477 = sand.u32 %s148, 1
        %s478 = scalar_lea.sflag [#allocation3], %s477
        %s479 = sand.u32 %s148, 1
        %s480 = smul.addr %s479, 16
        %s481 = scalar_lea.vmem [#allocation2], %s480
        // Predicated region
        $region37: #{tpu_custom_call.1} parent=35 // pred_check
          %p482 = pneg %p158
        $region38: #{tpu_custom_call.1} parent=35 // pred_check_branch
          %484 = sbr.rel (%p482) target = $region40
        $region39: #{tpu_custom_call.1} parent=35 // pred_region
          %s485 = smul.u32 2, %s23
          %s487 = ssub.s32 256, 256
          %488 = vsyncadd %s478, %s487
          %s489 = smul.addr %s22, 2
          %s490 = sadd.s32 %s485, %s489
          %s491 = smul.addr %s490, 128
          %s492 = scalar_lea.hbm %s4, %s491
          %s493 = sshll.u32 %s481, 4
          %s494 = int_to_ptr.vmem [resolvable:$true] %s493
          %499 = dma.vmem_to_hbm [thread:$0]  %s494, 256, %s492, %s478, 128, 128, 8
        $region40: #{tpu_custom_call.1} parent=35 // pred_fallthru
          _
      $region36: #{tpu_custom_call.1} parent=5 // pred_fallthru
        _
      %p500 = scmp.le.s32.totalorder 2, %s13
      // Predicated region
      $region41: #{tpu_custom_call.1} parent=5 // pred_check
        %p501 = pneg %p500
      $region42: #{tpu_custom_call.1} parent=5 // pred_check_branch
        %503 = sbr.rel (%p501) target = $region44
      $region43: #{tpu_custom_call.1} parent=5 // pred_region
        %s504 = ssub.s32 %s13, 2
        // Predicated region
        $region45: #{tpu_custom_call.1} parent=43 // pred_check
          %p505 = pneg %p164
        $region46: #{tpu_custom_call.1} parent=43 // pred_check_branch
          %507 = sbr.rel (%p505) target = $region48
        $region47: #{tpu_custom_call.1} parent=43 // pred_region
          %s508 = sand.u32 %s149, 1
          %s509 = scalar_lea.sflag [#allocation3], %s508
          %s510 = sand.u32 %s149, 1
          %s511 = smul.addr %s510, 16
          %s512 = scalar_lea.vmem [#allocation2], %s511
          %513 = dma.done %s509, 256
        $region48: #{tpu_custom_call.1} parent=43 // pred_fallthru
          _
      $region44: #{tpu_custom_call.1} parent=5 // pred_fallthru
        _
    $region6: #{tpu_custom_call.1} parent=1 // loop_footer
      %s17 = sadd.s32 1, %s13
    $region7: #{tpu_custom_call.1} parent=1 // loop_footer_branch
      %12 = sbr.rel target = $region3
    $region8: #{tpu_custom_call.1} parent=1 // loop_exit
      _
    %514 = vsyncpa [#allocation3], 1
    %s515 = scalar_lea.sflag [#allocation3], 1
    %516 = vsyncpa %s515, 1

</llo_original>
